<compile_context>
chip_gen: v7x
topology: tpu7x:2x2x1
jax: 0.10.0
libtpu: 0.0.40
codegen_flags: <defaults>
</compile_context>

<pallas_src>
import jax
import jax.numpy as jnp
from jax.experimental import pallas as pl
from jax.experimental.pallas import tpu as pltpu


def _patch_embed_kernel(x_ref, w_ref, b_ref, o_ref):
    """One image per grid step.

    x_ref: (1, C, Hp, p, Wp, p)   patch-structured view of one NCHW image
    w_ref: (C, p, p, Epad)        conv weight, transposed + lane-padded
    b_ref: (1, Epad)              f32 bias, lane-padded
    o_ref: (1, N, Epad)           N = Hp * Wp
    """
    _, C, Hp, p, Wp, _ = x_ref.shape
    n = Hp * Wp
    epad = o_ref.shape[-1]

    acc = jnp.zeros((n, epad), jnp.float32)
    # Tiny unrolled loop over (channel, kernel-row): C * p iterations (4 for the
    # default module).  Each iteration is a lane-dense K=p matmul on the MXU.
    for c in range(C):
        for h in range(p):
            # (Hp, Wp, p) -> (N, p): rows are patches in (row-major, col) order,
            # i.e. exactly the flatten(2).transpose(1, 2) ordering; features are
            # the p in-patch columns for this (c, h).
            lhs = x_ref[0, c, :, h, :, :].reshape(n, p)
            acc = acc + jnp.dot(lhs, w_ref[c, h, :, :],
                                preferred_element_type=jnp.float32)

    acc = acc + b_ref[...].astype(jnp.float32)
    o_ref[0, :, :] = acc.astype(o_ref.dtype)


def patch_embed(x, weight, bias, patch_size):
    """
    x:      (B, C, H, W)  NCHW, like the PyTorch module
    weight: (E, C, p, p)  PyTorch Conv2d weight layout
    bias:   (E,)
    returns (B, N, E) with N = (H // p) * (W // p)
    """
    B, C, H, W = x.shape
    E = weight.shape[0]
    p = patch_size
    assert H % p == 0 and W % p == 0, "image size must be divisible by patch size"
    Hp, Wp = H // p, W // p
    N = Hp * Wp
    K = C * p * p
    Epad = ((E + 127) // 128) * 128      # lane-dense output (unmasked stores)

    # Free (bitcast) reshape -- no HBM traffic, no materialized im2col.
    x6 = x.reshape(B, C, Hp, p, Wp, p)

    # Tiny weight/bias rearrangement: (E, C, p, p) -> (C, p, p, Epad).
    # Zero-padded lanes keep the padded output columns exactly zero.
    w_r = jnp.transpose(weight, (1, 2, 3, 0)).astype(x.dtype)
    b_r = bias.reshape(1, E).astype(jnp.float32)
    if Epad != E:
        w_r = jnp.pad(w_r, ((0, 0), (0, 0), (0, 0), (0, Epad - E)))
        b_r = jnp.pad(b_r, ((0, 0), (0, Epad - E)))

    cost = pl.CostEstimate(
        flops=2 * B * N * K * E,
        transcendentals=0,
        bytes_accessed=(x.size * x.dtype.itemsize
                        + w_r.size * w_r.dtype.itemsize
                        + b_r.size * 4
                        + B * N * Epad * x.dtype.itemsize),
    )

    # Grid over the batch only: per-step VMEM is one image plus one (N, Epad)
    # output slab (a few hundred KiB at these sizes), safely inside v7x's
    # 64 MiB VMEM, and B >= 2 parallel steps use both v7x TensorCores.
    # (For much larger images, additionally block the Hp axis.)
    out = pl.pallas_call(
        _patch_embed_kernel,
        out_shape=jax.ShapeDtypeStruct((B, N, Epad), x.dtype),
        grid_spec=pltpu.PrefetchScalarGridSpec(
            num_scalar_prefetch=0,
            grid=(B,),
            in_specs=[
                pl.BlockSpec((1, C, Hp, p, Wp, p),
                             lambda b: (b, 0, 0, 0, 0, 0)),     # one image
                pl.BlockSpec((C, p, p, Epad), lambda b: (0, 0, 0, 0)),
                pl.BlockSpec((1, Epad), lambda b: (0, 0)),
            ],
            out_specs=pl.BlockSpec((1, N, Epad), lambda b: (b, 0, 0)),
        ),
        compiler_params=pltpu.CompilerParams(
            dimension_semantics=("parallel",)),
        cost_estimate=cost,
    )(x6, w_r, b_r)

    if Epad != E:
        out = out[..., :E]   # drop zero lanes (fuses into downstream consumers)
    return out


if __name__ == "__main__":
    # Module defaults: img_size=(32, 64), patch_size=4, in_chans=1, embed_dim=96
    B, C, H, W = 2, 1, 32, 64
    p, E = 4, 96

    key = jax.random.PRNGKey(0)
    kx, kw, kb = jax.random.split(key, 3)
    x = jax.random.normal(kx, (B, C, H, W), dtype=jnp.float32)
    fan_in = C * p * p
    bound = 1.0 / (fan_in ** 0.5)
    weight = jax.random.uniform(kw, (E, C, p, p), minval=-bound, maxval=bound,
                                dtype=jnp.float32)
    bias = jax.random.uniform(kb, (E,), minval=-bound, maxval=bound,
                              dtype=jnp.float32)

    # f32 path
    out = jax.block_until_ready(patch_embed(x, weight, bias, p))

    # Pure-JAX reference (same math as the PyTorch module).
    patches_ref = x.reshape(B, C, H // p, p, W // p, p).transpose(
        0, 2, 4, 1, 3, 5).reshape(B, (H // p) * (W // p), fan_in)
    ref = patches_ref @ weight.reshape(E, fan_in).T + bias
    assert out.shape == (B, (H // p) * (W // p), E)
    assert jnp.allclose(out, ref, atol=1e-4, rtol=1e-4)

    # bf16 path (halves HBM traffic; f32 accumulation inside the kernel).
    out_bf16 = jax.block_until_ready(
        patch_embed(x.astype(jnp.bfloat16), weight.astype(jnp.bfloat16), bias, p))
    assert out_bf16.dtype == jnp.bfloat16
    assert jnp.allclose(out_bf16.astype(jnp.float32), ref, atol=1e-1, rtol=1e-1)

    print("KERNEL_OK")
</pallas_src>

<mosaic_0001>
module attributes {stable_mosaic.version = 11 : i64} {
  func.func @_patch_embed_kernel(%arg0: i32, %arg1: memref<1x1x8x4x16x4xf32, #tpu.memory_space<vmem>>, %arg2: memref<1x4x4x128xf32, #tpu.memory_space<vmem>>, %arg3: memref<1x128xf32, #tpu.memory_space<vmem>>, %arg4: memref<1x128x128xf32, #tpu.memory_space<vmem>>) attributes {dimension_semantics = [#tpu.dimension_semantics<parallel>], iteration_bounds = array<i64: 2>, scalar_prefetch = 0 : i64, scratch_operands = 0 : i64, tpu.core_type = #tpu.core_type<tc>, window_params = [{transform_indices = @transform_0, window_bounds = array<i64: 1, 1, 8, 4, 16, 4>}, {pipeline_mode = #tpu.pipeline_mode<synchronous>, transform_indices = @transform_1, window_bounds = array<i64: 1, 4, 4, 128>}, {pipeline_mode = #tpu.pipeline_mode<synchronous>, transform_indices = @transform_2, window_bounds = array<i64: 1, 128>}, {transform_indices = @transform_3, window_bounds = array<i64: 1, 128, 128>}]} {
    %cst = arith.constant 0.000000e+00 : f32
    %0 = vector.broadcast %cst : f32 to vector<128x128xf32>
    %c0 = arith.constant 0 : index
    %c0_0 = arith.constant 0 : index
    %c0_1 = arith.constant 0 : index
    %c0_2 = arith.constant 0 : index
    %c0_3 = arith.constant 0 : index
    %c0_4 = arith.constant 0 : index
    %1 = vector.load %arg1[%c0, %c0_0, %c0_1, %c0_2, %c0_3, %c0_4] : memref<1x1x8x4x16x4xf32, #tpu.memory_space<vmem>>, vector<1x1x8x1x16x4xf32>
    %2 = vector.shape_cast %1 : vector<1x1x8x1x16x4xf32> to vector<8x16x4xf32>
    %3 = vector.shape_cast %2 : vector<8x16x4xf32> to vector<128x4xf32>
    %c0_5 = arith.constant 0 : index
    %c0_6 = arith.constant 0 : index
    %c0_7 = arith.constant 0 : index
    %c0_8 = arith.constant 0 : index
    %4 = vector.load %arg2[%c0_5, %c0_6, %c0_7, %c0_8] : memref<1x4x4x128xf32, #tpu.memory_space<vmem>>, vector<1x1x4x128xf32>
    %5 = vector.shape_cast %4 : vector<1x1x4x128xf32> to vector<4x128xf32>
    %cst_9 = arith.constant dense<0.000000e+00> : vector<128x128xf32>
    %6 = tpu.matmul %3, %5, %cst_9 {dimension_numbers = #tpu.dot_dimension_numbers<[1], [0], [0], [1], [0, 0, 1, 1], [], []>} : vector<128x4xf32>, vector<4x128xf32>, vector<128x128xf32> -> vector<128x128xf32>
    %7 = arith.addf %0, %6 : vector<128x128xf32>
    %c0_10 = arith.constant 0 : index
    %c0_11 = arith.constant 0 : index
    %c0_12 = arith.constant 0 : index
    %c1 = arith.constant 1 : index
    %c0_13 = arith.constant 0 : index
    %c0_14 = arith.constant 0 : index
    %8 = vector.load %arg1[%c0_10, %c0_11, %c0_12, %c1, %c0_13, %c0_14] : memref<1x1x8x4x16x4xf32, #tpu.memory_space<vmem>>, vector<1x1x8x1x16x4xf32>
    %9 = vector.shape_cast %8 : vector<1x1x8x1x16x4xf32> to vector<8x16x4xf32>
    %10 = vector.shape_cast %9 : vector<8x16x4xf32> to vector<128x4xf32>
    %c0_15 = arith.constant 0 : index
    %c1_16 = arith.constant 1 : index
    %c0_17 = arith.constant 0 : index
    %c0_18 = arith.constant 0 : index
    %11 = vector.load %arg2[%c0_15, %c1_16, %c0_17, %c0_18] : memref<1x4x4x128xf32, #tpu.memory_space<vmem>>, vector<1x1x4x128xf32>
    %12 = vector.shape_cast %11 : vector<1x1x4x128xf32> to vector<4x128xf32>
    %cst_19 = arith.constant dense<0.000000e+00> : vector<128x128xf32>
    %13 = tpu.matmul %10, %12, %cst_19 {dimension_numbers = #tpu.dot_dimension_numbers<[1], [0], [0], [1], [0, 0, 1, 1], [], []>} : vector<128x4xf32>, vector<4x128xf32>, vector<128x128xf32> -> vector<128x128xf32>
    %14 = arith.addf %7, %13 : vector<128x128xf32>
    %c0_20 = arith.constant 0 : index
    %c0_21 = arith.constant 0 : index
    %c0_22 = arith.constant 0 : index
    %c2 = arith.constant 2 : index
    %c0_23 = arith.constant 0 : index
    %c0_24 = arith.constant 0 : index
    %15 = vector.load %arg1[%c0_20, %c0_21, %c0_22, %c2, %c0_23, %c0_24] : memref<1x1x8x4x16x4xf32, #tpu.memory_space<vmem>>, vector<1x1x8x1x16x4xf32>
    %16 = vector.shape_cast %15 : vector<1x1x8x1x16x4xf32> to vector<8x16x4xf32>
    %17 = vector.shape_cast %16 : vector<8x16x4xf32> to vector<128x4xf32>
    %c0_25 = arith.constant 0 : index
    %c2_26 = arith.constant 2 : index
    %c0_27 = arith.constant 0 : index
    %c0_28 = arith.constant 0 : index
    %18 = vector.load %arg2[%c0_25, %c2_26, %c0_27, %c0_28] : memref<1x4x4x128xf32, #tpu.memory_space<vmem>>, vector<1x1x4x128xf32>
    %19 = vector.shape_cast %18 : vector<1x1x4x128xf32> to vector<4x128xf32>
    %cst_29 = arith.constant dense<0.000000e+00> : vector<128x128xf32>
    %20 = tpu.matmul %17, %19, %cst_29 {dimension_numbers = #tpu.dot_dimension_numbers<[1], [0], [0], [1], [0, 0, 1, 1], [], []>} : vector<128x4xf32>, vector<4x128xf32>, vector<128x128xf32> -> vector<128x128xf32>
    %21 = arith.addf %14, %20 : vector<128x128xf32>
    %c0_30 = arith.constant 0 : index
    %c0_31 = arith.constant 0 : index
    %c0_32 = arith.constant 0 : index
    %c3 = arith.constant 3 : index
    %c0_33 = arith.constant 0 : index
    %c0_34 = arith.constant 0 : index
    %22 = vector.load %arg1[%c0_30, %c0_31, %c0_32, %c3, %c0_33, %c0_34] : memref<1x1x8x4x16x4xf32, #tpu.memory_space<vmem>>, vector<1x1x8x1x16x4xf32>
    %23 = vector.shape_cast %22 : vector<1x1x8x1x16x4xf32> to vector<8x16x4xf32>
    %24 = vector.shape_cast %23 : vector<8x16x4xf32> to vector<128x4xf32>
    %c0_35 = arith.constant 0 : index
    %c3_36 = arith.constant 3 : index
    %c0_37 = arith.constant 0 : index
    %c0_38 = arith.constant 0 : index
    %25 = vector.load %arg2[%c0_35, %c3_36, %c0_37, %c0_38] : memref<1x4x4x128xf32, #tpu.memory_space<vmem>>, vector<1x1x4x128xf32>
    %26 = vector.shape_cast %25 : vector<1x1x4x128xf32> to vector<4x128xf32>
    %cst_39 = arith.constant dense<0.000000e+00> : vector<128x128xf32>
    %27 = tpu.matmul %24, %26, %cst_39 {dimension_numbers = #tpu.dot_dimension_numbers<[1], [0], [0], [1], [0, 0, 1, 1], [], []>} : vector<128x4xf32>, vector<4x128xf32>, vector<128x128xf32> -> vector<128x128xf32>
    %28 = arith.addf %21, %27 : vector<128x128xf32>
    %c0_40 = arith.constant 0 : index
    %c0_41 = arith.constant 0 : index
    %29 = vector.load %arg3[%c0_40, %c0_41] : memref<1x128xf32, #tpu.memory_space<vmem>>, vector<1x128xf32>
    %30 = vector.broadcast %29 : vector<1x128xf32> to vector<128x128xf32>
    %31 = arith.addf %28, %30 : vector<128x128xf32>
    %c0_42 = arith.constant 0 : index
    %c0_43 = arith.constant 0 : index
    %c0_44 = arith.constant 0 : index
    %32 = vector.load %arg4[%c0_42, %c0_43, %c0_44] : memref<1x128x128xf32, #tpu.memory_space<vmem>>, vector<1x128x128xf32>
    %33 = vector.shape_cast %32 : vector<1x128x128xf32> to vector<128x128xf32>
    %34 = vector.shape_cast %31 : vector<128x128xf32> to vector<1x128x128xf32>
    tpu.vector_store %arg4[%c0_42, %c0_43, %c0_44], %34 {strides = array<i32>} : memref<1x128x128xf32, #tpu.memory_space<vmem>>, vector<1x128x128xf32>,
    return
  }
  func.func @transform_0(%arg0: i32) -> (i32, i32, i32, i32, i32, i32) {
    %c0_i32 = arith.constant 0 : i32
    %c0_i32_0 = arith.constant 0 : i32
    %c0_i32_1 = arith.constant 0 : i32
    %c0_i32_2 = arith.constant 0 : i32
    %c0_i32_3 = arith.constant 0 : i32
    %c0_i32_4 = arith.constant 0 : i32
    return %arg0, %c0_i32, %c0_i32_0, %c0_i32_1, %c0_i32_2, %c0_i32_3 : i32, i32, i32, i32, i32, i32
  }
  func.func @transform_1(%arg0: i32) -> (i32, i32, i32, i32) {
    %c0_i32 = arith.constant 0 : i32
    %c0_i32_0 = arith.constant 0 : i32
    %c0_i32_1 = arith.constant 0 : i32
    %c0_i32_2 = arith.constant 0 : i32
    %c0_i32_3 = arith.constant 0 : i32
    return %c0_i32, %c0_i32_0, %c0_i32_1, %c0_i32_2 : i32, i32, i32, i32
  }
  func.func @transform_2(%arg0: i32) -> (i32, i32) {
    %c0_i32 = arith.constant 0 : i32
    %c0_i32_0 = arith.constant 0 : i32
    %c0_i32_1 = arith.constant 0 : i32
    return %c0_i32, %c0_i32_0 : i32, i32
  }
  func.func @transform_3(%arg0: i32) -> (i32, i32, i32) {
    %c0_i32 = arith.constant 0 : i32
    %c0_i32_0 = arith.constant 0 : i32
    %c0_i32_1 = arith.constant 0 : i32
    return %arg0, %c0_i32, %c0_i32_0 : i32, i32, i32
  }
}

</mosaic_0001>

<llo_original>
// kernel: tpu_custom_call.1
$region0: #{tpu_custom_call.1}
  #allocation0 [shape = 'u32[]', space=smem, size = 0x4, offset = 0x4, fixed_abs, tag = 'smem constant byte address 0x4 - core index']
  #allocation1 [shape = 'u32[144,128]{1,0:T(1,128)}', space=vmem, size = 0x12000, scoped, tag = 'internal scratch']
  %s0 = inlined_call_operand.vmem [shape: f32[2,1,8,4,16,4], index: 0, kind: input, shape index: {}]
  %s1 = inlined_call_operand.vmem [shape: f32[1,4,4,128], index: 1, kind: input, shape index: {}]
  %s2 = inlined_call_operand.vmem [shape: f32[1,128], index: 2, kind: input, shape index: {}]
  %s3 = inlined_call_operand.hbm [shape: f32[2,128,128], index: 3, kind: output, shape index: {}]
  %s4 = sld [smem:[#allocation0]]
  $region45: #{tpu_custom_call.1} parent=0
    _
  %s6 = ssub.s32 1, %s4
  %s7 = scalar_select 0, %s6, %s4
  $region1: #{tpu_custom_call.1} parent=0
    #allocation2 [shape = 'u8[131072]{0}', space=vmem, size = 0x20000, scoped, tag = 'output window, operand 0']
    #allocation3 [shape = 's32[2]{0}', space=sflag, size = 0x8, scoped, tag = 'scoped memory for tpu_custom_call.1']
    %8 = vsyncpa [#allocation3], 0
    %s9 = scalar_lea.sflag [#allocation3], 1
    %10 = vsyncpa %s9, 0
    loop: start=0, step=1, limit=4
    $region2: #{tpu_custom_call.1} parent=1 // loop_pre_header
      _
    $region3: #{tpu_custom_call.1} parent=1 // loop_header
      %s12 = sphi 0, %s16
      %p13 = scmp.ge.s32.totalorder %s12, 4
      %s22 = sphi 0, %s24
      %s25 = sphi 0, %s22
      %s26 = sphi 0, %s25
      %s42 = sphi 0, %s26
      %s46 = sphi 0, %s46
      %s48 = sphi 0, %s46
      %s49 = sphi 0, %s48
      %s63 = sphi 0, %s49
      %s67 = sphi 0, %s67
      %s69 = sphi 0, %s67
      %s70 = sphi 0, %s69
      %s84 = sphi 0, %s70
      %s90 = sphi 0, %s92
      %s93 = sphi 0, %s90
      %s94 = sphi 0, %s93
      %s110 = sphi 0, %s94
    $region4: #{tpu_custom_call.1} parent=1 // loop_header_branch
      %15 = sbr.rel (%p13) target = $region8
    $region5: #{tpu_custom_call.1} parent=1 // loop_body
      %s17 = ssub.s32 %s12, 1
      %s18 = ssub.s32 %s12, 2
      %s19 = sadd.s32 %s12, 1
      %s20 = ssub.s32 %s12, %s19
      %p21 = scmp.eq.s32.totalorder %s20, 0
      %s23 = sadd.s32 %s22, 1
      %s24 = scalar_select %p21, %s22, %s23
      %p27 = pneg %p21
      %p28 = scmp.eq.s32.totalorder %s12, 1
      %p29 = por %p27, %p28
      %p30 = scmp.ne.s32.totalorder %s22, %s25
      %p31 = scmp.eq.s32.totalorder %s12, 0
      %p32 = por %p30, %p31
      %p33 = scmp.ne.s32.totalorder %s22, %s25
      %p34 = scmp.eq.s32.totalorder %s17, 1
      %p35 = por %p33, %p34
      %p36 = scmp.ne.s32.totalorder %s25, %s26
      %p37 = scmp.eq.s32.totalorder %s17, 0
      %p38 = por %p36, %p37
      %p39 = scmp.ne.s32.totalorder %s25, %s26
      %p40 = scmp.eq.s32.totalorder %s18, 1
      %p41 = por %p39, %p40
      %p43 = scmp.ne.s32.totalorder %s26, %s42
      %p44 = scmp.eq.s32.totalorder %s18, 0
      %p45 = por %p43, %p44
      %s47 = sadd.s32 %s46, 1
      %p50 = scmp.eq.s32.totalorder %s12, 1
      %p51 = scmp.ne.s32.totalorder %s46, %s48
      %p52 = scmp.eq.s32.totalorder %s12, 0
      %p53 = por %p51, %p52
      %p54 = scmp.ne.s32.totalorder %s46, %s48
      %p55 = scmp.eq.s32.totalorder %s17, 1
      %p56 = por %p54, %p55
      %p57 = scmp.ne.s32.totalorder %s48, %s49
      %p58 = scmp.eq.s32.totalorder %s17, 0
      %p59 = por %p57, %p58
      %p60 = scmp.ne.s32.totalorder %s48, %s49
      %p61 = scmp.eq.s32.totalorder %s18, 1
      %p62 = por %p60, %p61
      %p64 = scmp.ne.s32.totalorder %s49, %s63
      %p65 = scmp.eq.s32.totalorder %s18, 0
      %p66 = por %p64, %p65
      %s68 = sadd.s32 %s67, 1
      %p71 = scmp.eq.s32.totalorder %s12, 1
      %p72 = scmp.ne.s32.totalorder %s67, %s69
      %p73 = scmp.eq.s32.totalorder %s12, 0
      %p74 = por %p72, %p73
      %p75 = scmp.ne.s32.totalorder %s67, %s69
      %p76 = scmp.eq.s32.totalorder %s17, 1
      %p77 = por %p75, %p76
      %p78 = scmp.ne.s32.totalorder %s69, %s70
      %p79 = scmp.eq.s32.totalorder %s17, 0
      %p80 = por %p78, %p79
      %p81 = scmp.ne.s32.totalorder %s69, %s70
      %p82 = scmp.eq.s32.totalorder %s18, 1
      %p83 = por %p81, %p82
      %p85 = scmp.ne.s32.totalorder %s70, %s84
      %p86 = scmp.eq.s32.totalorder %s18, 0
      %p87 = por %p85, %p86
      %s88 = ssub.s32 %s12, %s19
      %p89 = scmp.eq.s32.totalorder %s88, 0
      %s91 = sadd.s32 %s90, 1
      %s92 = scalar_select %p89, %s90, %s91
      %p95 = pneg %p89
      %p96 = scmp.eq.s32.totalorder %s12, 1
      %p97 = por %p95, %p96
      %p98 = scmp.ne.s32.totalorder %s90, %s93
      %p99 = scmp.eq.s32.totalorder %s12, 0
      %p100 = por %p98, %p99
      %p101 = scmp.ne.s32.totalorder %s90, %s93
      %p102 = scmp.eq.s32.totalorder %s17, 1
      %p103 = por %p101, %p102
      %p104 = scmp.ne.s32.totalorder %s93, %s94
      %p105 = scmp.eq.s32.totalorder %s17, 0
      %p106 = por %p104, %p105
      %p107 = scmp.ne.s32.totalorder %s93, %s94
      %p108 = scmp.eq.s32.totalorder %s18, 1
      %p109 = por %p107, %p108
      %p111 = scmp.ne.s32.totalorder %s94, %s110
      %p112 = scmp.eq.s32.totalorder %s18, 0
      %p113 = por %p111, %p112
      %p114 = scmp.le.s32.totalorder 1, %s12
      %p115 = scmp.lt.s32.totalorder %s12, 3
      %p116 = pnand %p114, %p115
      %p117 = pneg %p116
      // Predicated region
      $region9: #{tpu_custom_call.1} parent=5 // pred_check
        _
      $region10: #{tpu_custom_call.1} parent=5 // pred_check_branch
        %119 = sbr.rel (%p116) target = $region12
      $region11: #{tpu_custom_call.1} parent=5 // pred_region
        %s120 = ssub.s32 %s12, 1
        // Predicated region
        $region13: #{tpu_custom_call.1} parent=11 // pred_check
          %p121 = pneg %p59
        $region14: #{tpu_custom_call.1} parent=11 // pred_check_branch
          %123 = sbr.rel (%p121) target = $region16
        $region15: #{tpu_custom_call.1} parent=11 // pred_region
          _
        $region16: #{tpu_custom_call.1} parent=11 // pred_fallthru
          _
        // Predicated region
        $region17: #{tpu_custom_call.1} parent=11 // pred_check
          %p124 = pneg %p80
        $region18: #{tpu_custom_call.1} parent=11 // pred_check_branch
          %126 = sbr.rel (%p124) target = $region20
        $region19: #{tpu_custom_call.1} parent=11 // pred_region
          _
        $region20: #{tpu_custom_call.1} parent=11 // pred_fallthru
          _
      $region12: #{tpu_custom_call.1} parent=5 // pred_fallthru
        _
      %p127 = scmp.lt.s32.totalorder %s12, 2
      // Predicated region
      $region21: #{tpu_custom_call.1} parent=5 // pred_check
        %p128 = pneg %p127
      $region22: #{tpu_custom_call.1} parent=5 // pred_check_branch
        %130 = sbr.rel (%p128) target = $region24
      $region23: #{tpu_custom_call.1} parent=5 // pred_region
        // Predicated region
        $region25: #{tpu_custom_call.1} parent=23 // pred_check
          %p131 = pneg %p32
        $region26: #{tpu_custom_call.1} parent=23 // pred_check_branch
          %133 = sbr.rel (%p131) target = $region28
        $region27: #{tpu_custom_call.1} parent=23 // pred_region
          %p134 = scmp.lt.s32.totalorder %s12, 1
          %s135 = scalar_select %p134, %s12, 1
          %s136 = smul.addr %s135, 64
          %s137 = smul.addr %s136, 8
          %s138 = scalar_lea.vmem %s0, %s137
        $region28: #{tpu_custom_call.1} parent=23 // pred_fallthru
          _
      $region24: #{tpu_custom_call.1} parent=5 // pred_fallthru
        _
      %p139 = scmp.le.s32.totalorder 1, %s12
      %p140 = scmp.lt.s32.totalorder %s12, 3
      %p141 = pnand %p139, %p140
      %p142 = pneg %p141
      // Predicated region
      $region29: #{tpu_custom_call.1} parent=5 // pred_check
        _
      $region30: #{tpu_custom_call.1} parent=5 // pred_check_branch
        %144 = sbr.rel (%p141) target = $region32
      $region31: #{tpu_custom_call.1} parent=5 // pred_region
        %s145 = ssub.s32 %s12, 1
        %p146 = scmp.lt.s32.totalorder %s17, 1
        %s147 = scalar_select %p146, %s17, 1
        %s148 = smul.addr %s147, 64
        %s149 = smul.addr %s148, 8
        %s150 = scalar_lea.vmem %s0, %s149
        %p151 = pneg %p38
        %p152 = pneg %p35
        %p153 = pneg %p59
        %p154 = pneg %p56
        %p155 = pneg %p80
        %p156 = pneg %p77
        %p157 = pneg %p106
        %p158 = pneg %p103
        %s159 = sand.u32 %s93, 1
        %s160 = scalar_lea.sflag [#allocation3], %s159
        %s161 = sand.u32 %s93, 1
        %s162 = smul.addr %s161, 128
        %s163 = scalar_lea.vmem [#allocation2], %s162
        %p164 = scmp.lt.s32.totalorder %s17, 1
        %s165 = scalar_select %p164, %s17, 1
        %s166 = smul.addr %s165, 64
        %s167 = smul.addr %s166, 8
        %s168 = scalar_lea.vmem %s0, %s167
        %v169 = vld [vmem:[%s168] sm:$0xff]
        %v170 = vld [vmem:[%s168 + $0x8] sm:$0xff]
        %v171 = vld [vmem:[%s168 + $0x40] sm:$0xff]
        %v172 = vld [vmem:[%s168 + $0x48] sm:$0xff]
        %v173 = vld [vmem:[%s168 + $0x80] sm:$0xff]
        %v174 = vld [vmem:[%s168 + $0x88] sm:$0xff]
        %v175 = vld [vmem:[%s168 + $0xc0] sm:$0xff]
        %v176 = vld [vmem:[%s168 + $0xc8] sm:$0xff]
        %v177 = vld [vmem:[%s168 + $0x100] sm:$0xff]
        %v178 = vld [vmem:[%s168 + $0x108] sm:$0xff]
        %v179 = vld [vmem:[%s168 + $0x140] sm:$0xff]
        %v180 = vld [vmem:[%s168 + $0x148] sm:$0xff]
        %v181 = vld [vmem:[%s168 + $0x180] sm:$0xff]
        %v182 = vld [vmem:[%s168 + $0x188] sm:$0xff]
        %v183 = vld [vmem:[%s168 + $0x1c0] sm:$0xff]
        %v184 = vld [vmem:[%s168 + $0x1c8] sm:$0xff]
        %v185 = vld [vmem:[%s1] sm:$0xf]
        %s186 = scalar_lea.vmem %s168, 16
        %v187 = vld [vmem:[%s186] sm:$0xff]
        %v188 = vld [vmem:[%s186 + $0x8] sm:$0xff]
        %v189 = vld [vmem:[%s186 + $0x40] sm:$0xff]
        %v190 = vld [vmem:[%s186 + $0x48] sm:$0xff]
        %v191 = vld [vmem:[%s186 + $0x80] sm:$0xff]
        %v192 = vld [vmem:[%s186 + $0x88] sm:$0xff]
        %v193 = vld [vmem:[%s186 + $0xc0] sm:$0xff]
        %v194 = vld [vmem:[%s186 + $0xc8] sm:$0xff]
        %v195 = vld [vmem:[%s186 + $0x100] sm:$0xff]
        %v196 = vld [vmem:[%s186 + $0x108] sm:$0xff]
        %v197 = vld [vmem:[%s186 + $0x140] sm:$0xff]
        %v198 = vld [vmem:[%s186 + $0x148] sm:$0xff]
        %v199 = vld [vmem:[%s186 + $0x180] sm:$0xff]
        %v200 = vld [vmem:[%s186 + $0x188] sm:$0xff]
        %v201 = vld [vmem:[%s186 + $0x1c0] sm:$0xff]
        %v202 = vld [vmem:[%s186 + $0x1c8] sm:$0xff]
        %s203 = scalar_lea.vmem %s1, 4
        %v204 = vld [vmem:[%s203] sm:$0xf]
        %vm205 = vcmask 31744
        %v207 = vsel %vm205, %v187, 0
        %v210 = vsel %vm205, %v188, 0
        %v213 = vsel %vm205, %v189, 0
        %v216 = vsel %vm205, %v190, 0
        %v219 = vsel %vm205, %v191, 0
        %v222 = vsel %vm205, %v192, 0
        %v225 = vsel %vm205, %v193, 0
        %v228 = vsel %vm205, %v194, 0
        %v231 = vsel %vm205, %v195, 0
        %v234 = vsel %vm205, %v196, 0
        %v237 = vsel %vm205, %v197, 0
        %v240 = vsel %vm205, %v198, 0
        %v243 = vsel %vm205, %v199, 0
        %v246 = vsel %vm205, %v200, 0
        %v249 = vsel %vm205, %v201, 0
        %v252 = vsel %vm205, %v202, 0
        %vm254 = vcmask 1043456
        %v256 = vsel %vm254, %v204, 0
        %258 = vmatprep.subr.mxu0 0.0
        %259 = vmatpush1.msra.mxu0 %v256
        %260 = vmatprep.subr.mxu0 0.0
        %261 = vmatpush1.msra.mxu0 0.0
        %262 = vmatprep.subr.mxu0 0.0
        %263 = vmatpush1.msra.mxu0 0.0
        %264 = vmatprep.subr.mxu0 0.0
        %265 = vmatpush1.msra.mxu0 0.0
        %266 = vmatprep.subr.mxu0 0.0
        %267 = vmatpush1.msra.mxu0 0.0
        %268 = vmatprep.subr.mxu0 0.0
        %269 = vmatpush1.msra.mxu0 0.0
        %270 = vmatprep.subr.mxu0 0.0
        %271 = vmatpush1.msra.mxu0 0.0
        %272 = vmatprep.subr.mxu0 0.0
        %273 = vmatpush1.msra.mxu0 0.0
        %274 = vmatprep.subr.mxu0 0.0
        %275 = vmatpush1.msra.mxu0 0.0
        %276 = vmatprep.subr.mxu0 0.0
        %277 = vmatpush1.msra.mxu0 0.0
        %278 = vmatprep.subr.mxu0 0.0
        %279 = vmatpush1.msra.mxu0 0.0
        %280 = vmatprep.subr.mxu0 0.0
        %281 = vmatpush1.msra.mxu0 0.0
        %282 = vmatprep.subr.mxu0 0.0
        %283 = vmatpush1.msra.mxu0 0.0
        %284 = vmatprep.subr.mxu0 0.0
        %285 = vmatpush1.msra.mxu0 0.0
        %286 = vmatprep.subr.mxu0 0.0
        %287 = vmatpush1.msra.mxu0 0.0
        %288 = vmatprep.subr.mxu0 0.0
        %289 = vmatpush1.msra.mxu0 0.0
        %290 = vmatprep.subr.mxu0 0.0
        %291 = vmatpush1.msra.mxu0 0.0
        %292 = vmatprep.subr.mxu0 0.0
        %293 = vmatpush1.msra.mxu0 0.0
        %294 = vmatprep.subr.mxu0 0.0
        %295 = vmatpush1.msra.mxu0 0.0
        %296 = vmatprep.subr.mxu0 0.0
        %297 = vmatpush1.msra.mxu0 0.0
        %298 = vmatprep.subr.mxu0 0.0
        %299 = vmatpush1.msra.mxu0 0.0
        %300 = vmatprep.subr.mxu0 0.0
        %301 = vmatpush1.msra.mxu0 0.0
        %302 = vmatprep.subr.mxu0 0.0
        %303 = vmatpush1.msra.mxu0 0.0
        %304 = vmatprep.subr.mxu0 0.0
        %305 = vmatpush1.msra.mxu0 0.0
        %306 = vmatprep.subr.mxu0 0.0
        %307 = vmatpush1.msra.mxu0 0.0
        %308 = vmatprep.subr.mxu0 0.0
        %309 = vmatpush1.msra.mxu0 0.0
        %310 = vmatprep.subr.mxu0 0.0
        %311 = vmatpush1.msra.mxu0 0.0
        %312 = vmatprep.subr.mxu0 0.0
        %313 = vmatpush1.msra.mxu0 0.0
        %314 = vmatprep.subr.mxu0 0.0
        %315 = vmatpush1.msra.mxu0 0.0
        %316 = vmatprep.subr.mxu0 0.0
        %317 = vmatpush1.msra.mxu0 0.0
        %318 = vmatprep.subr.mxu0 0.0
        %319 = vmatpush1.msra.mxu0 0.0
        %320 = vmatprep.subr.mxu0 0.0
        %321 = vmatpush1.msra.mxu0 0.0
        %322 = vmatprep.mubr.f32.mxu0 0.0
        %323 = vmatmul.mubr.f32.gmra.mrb[0].mxu0 %v207
        %v324 = vpop.f32.mrb[0].mxu0
        %v325 = vadd.f32 0.0, %v324
        %v326 = vpop.f32.mrb[0].mxu0
        %327 = vmatprep.mubr.f32.mxu0 0.0
        %328 = vmatmul.mubr.f32.gmra.mrb[0].mxu0 %v210
        %v329 = vpop.f32.mrb[0].mxu0
        %v330 = vadd.f32 0.0, %v329
        %v331 = vpop.f32.mrb[0].mxu0
        %332 = vmatprep.mubr.f32.mxu0 0.0
        %333 = vmatmul.mubr.f32.gmra.mrb[0].mxu0 %v213
        %v334 = vpop.f32.mrb[0].mxu0
        %v335 = vadd.f32 0.0, %v334
        %v336 = vpop.f32.mrb[0].mxu0
        %337 = vmatprep.mubr.f32.mxu0 0.0
        %338 = vmatmul.mubr.f32.gmra.mrb[0].mxu0 %v216
        %v339 = vpop.f32.mrb[0].mxu0
        %v340 = vadd.f32 0.0, %v339
        %v341 = vpop.f32.mrb[0].mxu0
        %342 = vmatprep.mubr.f32.mxu0 0.0
        %343 = vmatmul.mubr.f32.gmra.mrb[0].mxu0 %v219
        %v344 = vpop.f32.mrb[0].mxu0
        %v345 = vadd.f32 0.0, %v344
        %v346 = vpop.f32.mrb[0].mxu0
        %347 = vmatprep.mubr.f32.mxu0 0.0
        %348 = vmatmul.mubr.f32.gmra.mrb[0].mxu0 %v222
        %v349 = vpop.f32.mrb[0].mxu0
        %v350 = vadd.f32 0.0, %v349
        %v351 = vpop.f32.mrb[0].mxu0
        %352 = vmatprep.mubr.f32.mxu0 0.0
        %353 = vmatmul.mubr.f32.gmra.mrb[0].mxu0 %v225
        %v354 = vpop.f32.mrb[0].mxu0
        %v355 = vadd.f32 0.0, %v354
        %v356 = vpop.f32.mrb[0].mxu0
        %357 = vmatprep.mubr.f32.mxu0 0.0
        %358 = vmatmul.mubr.f32.gmra.mrb[0].mxu0 %v228
        %v359 = vpop.f32.mrb[0].mxu0
        %v360 = vadd.f32 0.0, %v359
        %v361 = vpop.f32.mrb[0].mxu0
        %362 = vmatprep.mubr.f32.mxu0 0.0
        %363 = vmatmul.mubr.f32.gmra.mrb[0].mxu0 %v231
        %v364 = vpop.f32.mrb[0].mxu0
        %v365 = vadd.f32 0.0, %v364
        %v366 = vpop.f32.mrb[0].mxu0
        %367 = vmatprep.mubr.f32.mxu0 0.0
        %368 = vmatmul.mubr.f32.gmra.mrb[0].mxu0 %v234
        %v369 = vpop.f32.mrb[0].mxu0
        %v370 = vadd.f32 0.0, %v369
        %v371 = vpop.f32.mrb[0].mxu0
        %372 = vmatprep.mubr.f32.mxu0 0.0
        %373 = vmatmul.mubr.f32.gmra.mrb[0].mxu0 %v237
        %v374 = vpop.f32.mrb[0].mxu0
        %v375 = vadd.f32 0.0, %v374
        %v376 = vpop.f32.mrb[0].mxu0
        %377 = vmatprep.mubr.f32.mxu0 0.0
        %378 = vmatmul.mubr.f32.gmra.mrb[0].mxu0 %v240
        %v379 = vpop.f32.mrb[0].mxu0
        %v380 = vadd.f32 0.0, %v379
        %v381 = vpop.f32.mrb[0].mxu0
        %382 = vmatprep.mubr.f32.mxu0 0.0
        %383 = vmatmul.mubr.f32.gmra.mrb[0].mxu0 %v243
        %v384 = vpop.f32.mrb[0].mxu0
        %v385 = vadd.f32 0.0, %v384
        %v386 = vpop.f32.mrb[0].mxu0
        %387 = vmatprep.mubr.f32.mxu0 0.0
        %388 = vmatmul.mubr.f32.gmra.mrb[0].mxu0 %v246
        %v389 = vpop.f32.mrb[0].mxu0
        %v390 = vadd.f32 0.0, %v389
        %v391 = vpop.f32.mrb[0].mxu0
        %392 = vmatprep.mubr.f32.mxu0 0.0
        %393 = vmatmul.mubr.f32.gmra.mrb[0].mxu0 %v249
        %v394 = vpop.f32.mrb[0].mxu0
        %v395 = vadd.f32 0.0, %v394
        %v396 = vpop.f32.mrb[0].mxu0
        %397 = vmatprep.mubr.f32.mxu0 0.0
        %398 = vmatmul.mubr.f32.gmra.mrb[0].mxu0 %v252
        %v399 = vpop.f32.mrb[0].mxu0
        %v400 = vadd.f32 0.0, %v399
        %v401 = vpop.f32.mrb[0].mxu0
        %402 = vdwg.mxu0
        %v404 = vsel %vm205, %v169, 0
        %v407 = vsel %vm205, %v170, 0
        %v410 = vsel %vm205, %v171, 0
        %v413 = vsel %vm205, %v172, 0
        %v416 = vsel %vm205, %v173, 0
        %v419 = vsel %vm205, %v174, 0
        %v422 = vsel %vm205, %v175, 0
        %v425 = vsel %vm205, %v176, 0
        %v428 = vsel %vm205, %v177, 0
        %v431 = vsel %vm205, %v178, 0
        %v434 = vsel %vm205, %v179, 0
        %v437 = vsel %vm205, %v180, 0
        %v440 = vsel %vm205, %v181, 0
        %v443 = vsel %vm205, %v182, 0
        %v446 = vsel %vm205, %v183, 0
        %v449 = vsel %vm205, %v184, 0
        %v452 = vsel %vm254, %v185, 0
        %454 = vmatprep.subr.mxu0 0.0
        %455 = vmatpush1.msra.mxu0 %v452
        %456 = vmatprep.subr.mxu0 0.0
        %457 = vmatpush1.msra.mxu0 0.0
        %458 = vmatprep.subr.mxu0 0.0
        %459 = vmatpush1.msra.mxu0 0.0
        %460 = vmatprep.subr.mxu0 0.0
        %461 = vmatpush1.msra.mxu0 0.0
        %462 = vmatprep.subr.mxu0 0.0
        %463 = vmatpush1.msra.mxu0 0.0
        %464 = vmatprep.subr.mxu0 0.0
        %465 = vmatpush1.msra.mxu0 0.0
        %466 = vmatprep.subr.mxu0 0.0
        %467 = vmatpush1.msra.mxu0 0.0
        %468 = vmatprep.subr.mxu0 0.0
        %469 = vmatpush1.msra.mxu0 0.0
        %470 = vmatprep.subr.mxu0 0.0
        %471 = vmatpush1.msra.mxu0 0.0
        %472 = vmatprep.subr.mxu0 0.0
        %473 = vmatpush1.msra.mxu0 0.0
        %474 = vmatprep.subr.mxu0 0.0
        %475 = vmatpush1.msra.mxu0 0.0
        %476 = vmatprep.subr.mxu0 0.0
        %477 = vmatpush1.msra.mxu0 0.0
        %478 = vmatprep.subr.mxu0 0.0
        %479 = vmatpush1.msra.mxu0 0.0
        %480 = vmatprep.subr.mxu0 0.0
        %481 = vmatpush1.msra.mxu0 0.0
        %482 = vmatprep.subr.mxu0 0.0
        %483 = vmatpush1.msra.mxu0 0.0
        %484 = vmatprep.subr.mxu0 0.0
        %485 = vmatpush1.msra.mxu0 0.0
        %486 = vmatprep.subr.mxu0 0.0
        %487 = vmatpush1.msra.mxu0 0.0
        %488 = vmatprep.subr.mxu0 0.0
        %489 = vmatpush1.msra.mxu0 0.0
        %490 = vmatprep.subr.mxu0 0.0
        %491 = vmatpush1.msra.mxu0 0.0
        %492 = vmatprep.subr.mxu0 0.0
        %493 = vmatpush1.msra.mxu0 0.0
        %494 = vmatprep.subr.mxu0 0.0
        %495 = vmatpush1.msra.mxu0 0.0
        %496 = vmatprep.subr.mxu0 0.0
        %497 = vmatpush1.msra.mxu0 0.0
        %498 = vmatprep.subr.mxu0 0.0
        %499 = vmatpush1.msra.mxu0 0.0
        %500 = vmatprep.subr.mxu0 0.0
        %501 = vmatpush1.msra.mxu0 0.0
        %502 = vmatprep.subr.mxu0 0.0
        %503 = vmatpush1.msra.mxu0 0.0
        %504 = vmatprep.subr.mxu0 0.0
        %505 = vmatpush1.msra.mxu0 0.0
        %506 = vmatprep.subr.mxu0 0.0
        %507 = vmatpush1.msra.mxu0 0.0
        %508 = vmatprep.subr.mxu0 0.0
        %509 = vmatpush1.msra.mxu0 0.0
        %510 = vmatprep.subr.mxu0 0.0
        %511 = vmatpush1.msra.mxu0 0.0
        %512 = vmatprep.subr.mxu0 0.0
        %513 = vmatpush1.msra.mxu0 0.0
        %514 = vmatprep.subr.mxu0 0.0
        %515 = vmatpush1.msra.mxu0 0.0
        %516 = vmatprep.subr.mxu0 0.0
        %517 = vmatpush1.msra.mxu0 0.0
        %518 = vmatprep.mubr.f32.mxu0 0.0
        %519 = vmatmul.mubr.f32.gmra.mrb[0].mxu0 %v404
        %v520 = vpop.f32.mrb[0].mxu0
        %v521 = vadd.f32 %v325, %v520
        %v522 = vpop.f32.mrb[0].mxu0
        %523 = vmatprep.mubr.f32.mxu0 0.0
        %524 = vmatmul.mubr.f32.gmra.mrb[0].mxu0 %v407
        %v525 = vpop.f32.mrb[0].mxu0
        %v526 = vadd.f32 %v330, %v525
        %v527 = vpop.f32.mrb[0].mxu0
        %528 = vmatprep.mubr.f32.mxu0 0.0
        %529 = vmatmul.mubr.f32.gmra.mrb[0].mxu0 %v410
        %v530 = vpop.f32.mrb[0].mxu0
        %v531 = vadd.f32 %v335, %v530
        %v532 = vpop.f32.mrb[0].mxu0
        %533 = vmatprep.mubr.f32.mxu0 0.0
        %534 = vmatmul.mubr.f32.gmra.mrb[0].mxu0 %v413
        %v535 = vpop.f32.mrb[0].mxu0
        %v536 = vadd.f32 %v340, %v535
        %v537 = vpop.f32.mrb[0].mxu0
        %538 = vmatprep.mubr.f32.mxu0 0.0
        %539 = vmatmul.mubr.f32.gmra.mrb[0].mxu0 %v416
        %v540 = vpop.f32.mrb[0].mxu0
        %v541 = vadd.f32 %v345, %v540
        %v542 = vpop.f32.mrb[0].mxu0
        %543 = vmatprep.mubr.f32.mxu0 0.0
        %544 = vmatmul.mubr.f32.gmra.mrb[0].mxu0 %v419
        %v545 = vpop.f32.mrb[0].mxu0
        %v546 = vadd.f32 %v350, %v545
        %v547 = vpop.f32.mrb[0].mxu0
        %548 = vmatprep.mubr.f32.mxu0 0.0
        %549 = vmatmul.mubr.f32.gmra.mrb[0].mxu0 %v422
        %v550 = vpop.f32.mrb[0].mxu0
        %v551 = vadd.f32 %v355, %v550
        %v552 = vpop.f32.mrb[0].mxu0
        %553 = vmatprep.mubr.f32.mxu0 0.0
        %554 = vmatmul.mubr.f32.gmra.mrb[0].mxu0 %v425
        %v555 = vpop.f32.mrb[0].mxu0
        %v556 = vadd.f32 %v360, %v555
        %v557 = vpop.f32.mrb[0].mxu0
        %558 = vmatprep.mubr.f32.mxu0 0.0
        %559 = vmatmul.mubr.f32.gmra.mrb[0].mxu0 %v428
        %v560 = vpop.f32.mrb[0].mxu0
        %v561 = vadd.f32 %v365, %v560
        %v562 = vpop.f32.mrb[0].mxu0
        %563 = vmatprep.mubr.f32.mxu0 0.0
        %564 = vmatmul.mubr.f32.gmra.mrb[0].mxu0 %v431
        %v565 = vpop.f32.mrb[0].mxu0
        %v566 = vadd.f32 %v370, %v565
        %v567 = vpop.f32.mrb[0].mxu0
        %568 = vmatprep.mubr.f32.mxu0 0.0
        %569 = vmatmul.mubr.f32.gmra.mrb[0].mxu0 %v434
        %v570 = vpop.f32.mrb[0].mxu0
        %v571 = vadd.f32 %v375, %v570
        %v572 = vpop.f32.mrb[0].mxu0
        %573 = vmatprep.mubr.f32.mxu0 0.0
        %574 = vmatmul.mubr.f32.gmra.mrb[0].mxu0 %v437
        %v575 = vpop.f32.mrb[0].mxu0
        %v576 = vadd.f32 %v380, %v575
        %v577 = vpop.f32.mrb[0].mxu0
        %578 = vmatprep.mubr.f32.mxu0 0.0
        %579 = vmatmul.mubr.f32.gmra.mrb[0].mxu0 %v440
        %v580 = vpop.f32.mrb[0].mxu0
        %v581 = vadd.f32 %v385, %v580
        %v582 = vpop.f32.mrb[0].mxu0
        %583 = vmatprep.mubr.f32.mxu0 0.0
        %584 = vmatmul.mubr.f32.gmra.mrb[0].mxu0 %v443
        %v585 = vpop.f32.mrb[0].mxu0
        %v586 = vadd.f32 %v390, %v585
        %v587 = vpop.f32.mrb[0].mxu0
        %588 = vmatprep.mubr.f32.mxu0 0.0
        %589 = vmatmul.mubr.f32.gmra.mrb[0].mxu0 %v446
        %v590 = vpop.f32.mrb[0].mxu0
        %v591 = vadd.f32 %v395, %v590
        %v592 = vpop.f32.mrb[0].mxu0
        %593 = vmatprep.mubr.f32.mxu0 0.0
        %594 = vmatmul.mubr.f32.gmra.mrb[0].mxu0 %v449
        %v595 = vpop.f32.mrb[0].mxu0
        %v596 = vadd.f32 %v400, %v595
        %v597 = vpop.f32.mrb[0].mxu0
        %598 = vdwg.mxu0
        %s599 = scalar_lea.vmem %s168, 32
        %v600 = vld [vmem:[%s599] sm:$0xff]
        %v601 = vld [vmem:[%s599 + $0x8] sm:$0xff]
        %v602 = vld [vmem:[%s599 + $0x40] sm:$0xff]
        %v603 = vld [vmem:[%s599 + $0x48] sm:$0xff]
        %v604 = vld [vmem:[%s599 + $0x80] sm:$0xff]
        %v605 = vld [vmem:[%s599 + $0x88] sm:$0xff]
        %v606 = vld [vmem:[%s599 + $0xc0] sm:$0xff]
        %v607 = vld [vmem:[%s599 + $0xc8] sm:$0xff]
        %v608 = vld [vmem:[%s599 + $0x100] sm:$0xff]
        %v609 = vld [vmem:[%s599 + $0x108] sm:$0xff]
        %v610 = vld [vmem:[%s599 + $0x140] sm:$0xff]
        %v611 = vld [vmem:[%s599 + $0x148] sm:$0xff]
        %v612 = vld [vmem:[%s599 + $0x180] sm:$0xff]
        %v613 = vld [vmem:[%s599 + $0x188] sm:$0xff]
        %v614 = vld [vmem:[%s599 + $0x1c0] sm:$0xff]
        %v615 = vld [vmem:[%s599 + $0x1c8] sm:$0xff]
        %s616 = scalar_lea.vmem %s1, 8
        %v617 = vld [vmem:[%s616] sm:$0xf]
        %v619 = vsel %vm205, %v600, 0
        %v622 = vsel %vm205, %v601, 0
        %v625 = vsel %vm205, %v602, 0
        %v628 = vsel %vm205, %v603, 0
        %v631 = vsel %vm205, %v604, 0
        %v634 = vsel %vm205, %v605, 0
        %v637 = vsel %vm205, %v606, 0
        %v640 = vsel %vm205, %v607, 0
        %v643 = vsel %vm205, %v608, 0
        %v646 = vsel %vm205, %v609, 0
        %v649 = vsel %vm205, %v610, 0
        %v652 = vsel %vm205, %v611, 0
        %v655 = vsel %vm205, %v612, 0
        %v658 = vsel %vm205, %v613, 0
        %v661 = vsel %vm205, %v614, 0
        %v664 = vsel %vm205, %v615, 0
        %v667 = vsel %vm254, %v617, 0
        %669 = vmatprep.subr.mxu0 0.0
        %670 = vmatpush1.msra.mxu0 %v667
        %671 = vmatprep.subr.mxu0 0.0
        %672 = vmatpush1.msra.mxu0 0.0
        %673 = vmatprep.subr.mxu0 0.0
        %674 = vmatpush1.msra.mxu0 0.0
        %675 = vmatprep.subr.mxu0 0.0
        %676 = vmatpush1.msra.mxu0 0.0
        %677 = vmatprep.subr.mxu0 0.0
        %678 = vmatpush1.msra.mxu0 0.0
        %679 = vmatprep.subr.mxu0 0.0
        %680 = vmatpush1.msra.mxu0 0.0
        %681 = vmatprep.subr.mxu0 0.0
        %682 = vmatpush1.msra.mxu0 0.0
        %683 = vmatprep.subr.mxu0 0.0
        %684 = vmatpush1.msra.mxu0 0.0
        %685 = vmatprep.subr.mxu0 0.0
        %686 = vmatpush1.msra.mxu0 0.0
        %687 = vmatprep.subr.mxu0 0.0
        %688 = vmatpush1.msra.mxu0 0.0
        %689 = vmatprep.subr.mxu0 0.0
        %690 = vmatpush1.msra.mxu0 0.0
        %691 = vmatprep.subr.mxu0 0.0
        %692 = vmatpush1.msra.mxu0 0.0
        %693 = vmatprep.subr.mxu0 0.0
        %694 = vmatpush1.msra.mxu0 0.0
        %695 = vmatprep.subr.mxu0 0.0
        %696 = vmatpush1.msra.mxu0 0.0
        %697 = vmatprep.subr.mxu0 0.0
        %698 = vmatpush1.msra.mxu0 0.0
        %699 = vmatprep.subr.mxu0 0.0
        %700 = vmatpush1.msra.mxu0 0.0
        %701 = vmatprep.subr.mxu0 0.0
        %702 = vmatpush1.msra.mxu0 0.0
        %703 = vmatprep.subr.mxu0 0.0
        %704 = vmatpush1.msra.mxu0 0.0
        %705 = vmatprep.subr.mxu0 0.0
        %706 = vmatpush1.msra.mxu0 0.0
        %707 = vmatprep.subr.mxu0 0.0
        %708 = vmatpush1.msra.mxu0 0.0
        %709 = vmatprep.subr.mxu0 0.0
        %710 = vmatpush1.msra.mxu0 0.0
        %711 = vmatprep.subr.mxu0 0.0
        %712 = vmatpush1.msra.mxu0 0.0
        %713 = vmatprep.subr.mxu0 0.0
        %714 = vmatpush1.msra.mxu0 0.0
        %715 = vmatprep.subr.mxu0 0.0
        %716 = vmatpush1.msra.mxu0 0.0
        %717 = vmatprep.subr.mxu0 0.0
        %718 = vmatpush1.msra.mxu0 0.0
        %719 = vmatprep.subr.mxu0 0.0
        %720 = vmatpush1.msra.mxu0 0.0
        %721 = vmatprep.subr.mxu0 0.0
        %722 = vmatpush1.msra.mxu0 0.0
        %723 = vmatprep.subr.mxu0 0.0
        %724 = vmatpush1.msra.mxu0 0.0
        %725 = vmatprep.subr.mxu0 0.0
        %726 = vmatpush1.msra.mxu0 0.0
        %727 = vmatprep.subr.mxu0 0.0
        %728 = vmatpush1.msra.mxu0 0.0
        %729 = vmatprep.subr.mxu0 0.0
        %730 = vmatpush1.msra.mxu0 0.0
        %731 = vmatprep.subr.mxu0 0.0
        %732 = vmatpush1.msra.mxu0 0.0
        %733 = vmatprep.mubr.f32.mxu0 0.0
        %734 = vmatmul.mubr.f32.gmra.mrb[0].mxu0 %v619
        %v735 = vpop.f32.mrb[0].mxu0
        %v736 = vadd.f32 0.0, %v735
        %v737 = vpop.f32.mrb[0].mxu0
        %738 = vmatprep.mubr.f32.mxu0 0.0
        %739 = vmatmul.mubr.f32.gmra.mrb[0].mxu0 %v622
        %v740 = vpop.f32.mrb[0].mxu0
        %v741 = vadd.f32 0.0, %v740
        %v742 = vpop.f32.mrb[0].mxu0
        %743 = vmatprep.mubr.f32.mxu0 0.0
        %744 = vmatmul.mubr.f32.gmra.mrb[0].mxu0 %v625
        %v745 = vpop.f32.mrb[0].mxu0
        %v746 = vadd.f32 0.0, %v745
        %v747 = vpop.f32.mrb[0].mxu0
        %748 = vmatprep.mubr.f32.mxu0 0.0
        %749 = vmatmul.mubr.f32.gmra.mrb[0].mxu0 %v628
        %v750 = vpop.f32.mrb[0].mxu0
        %v751 = vadd.f32 0.0, %v750
        %v752 = vpop.f32.mrb[0].mxu0
        %753 = vmatprep.mubr.f32.mxu0 0.0
        %754 = vmatmul.mubr.f32.gmra.mrb[0].mxu0 %v631
        %v755 = vpop.f32.mrb[0].mxu0
        %v756 = vadd.f32 0.0, %v755
        %v757 = vpop.f32.mrb[0].mxu0
        %758 = vmatprep.mubr.f32.mxu0 0.0
        %759 = vmatmul.mubr.f32.gmra.mrb[0].mxu0 %v634
        %v760 = vpop.f32.mrb[0].mxu0
        %v761 = vadd.f32 0.0, %v760
        %v762 = vpop.f32.mrb[0].mxu0
        %763 = vmatprep.mubr.f32.mxu0 0.0
        %764 = vmatmul.mubr.f32.gmra.mrb[0].mxu0 %v637
        %v765 = vpop.f32.mrb[0].mxu0
        %v766 = vadd.f32 0.0, %v765
        %v767 = vpop.f32.mrb[0].mxu0
        %768 = vmatprep.mubr.f32.mxu0 0.0
        %769 = vmatmul.mubr.f32.gmra.mrb[0].mxu0 %v640
        %v770 = vpop.f32.mrb[0].mxu0
        %v771 = vadd.f32 0.0, %v770
        %v772 = vpop.f32.mrb[0].mxu0
        %773 = vmatprep.mubr.f32.mxu0 0.0
        %774 = vmatmul.mubr.f32.gmra.mrb[0].mxu0 %v643
        %v775 = vpop.f32.mrb[0].mxu0
        %v776 = vadd.f32 0.0, %v775
        %v777 = vpop.f32.mrb[0].mxu0
        %778 = vmatprep.mubr.f32.mxu0 0.0
        %779 = vmatmul.mubr.f32.gmra.mrb[0].mxu0 %v646
        %v780 = vpop.f32.mrb[0].mxu0
        %v781 = vadd.f32 0.0, %v780
        %v782 = vpop.f32.mrb[0].mxu0
        %783 = vmatprep.mubr.f32.mxu0 0.0
        %784 = vmatmul.mubr.f32.gmra.mrb[0].mxu0 %v649
        %v785 = vpop.f32.mrb[0].mxu0
        %v786 = vadd.f32 0.0, %v785
        %v787 = vpop.f32.mrb[0].mxu0
        %788 = vmatprep.mubr.f32.mxu0 0.0
        %789 = vmatmul.mubr.f32.gmra.mrb[0].mxu0 %v652
        %v790 = vpop.f32.mrb[0].mxu0
        %v791 = vadd.f32 0.0, %v790
        %v792 = vpop.f32.mrb[0].mxu0
        %793 = vmatprep.mubr.f32.mxu0 0.0
        %794 = vmatmul.mubr.f32.gmra.mrb[0].mxu0 %v655
        %v795 = vpop.f32.mrb[0].mxu0
        %v796 = vadd.f32 0.0, %v795
        %v797 = vpop.f32.mrb[0].mxu0
        %798 = vmatprep.mubr.f32.mxu0 0.0
        %799 = vmatmul.mubr.f32.gmra.mrb[0].mxu0 %v658
        %v800 = vpop.f32.mrb[0].mxu0
        %v801 = vadd.f32 0.0, %v800
        %v802 = vpop.f32.mrb[0].mxu0
        %803 = vmatprep.mubr.f32.mxu0 0.0
        %804 = vmatmul.mubr.f32.gmra.mrb[0].mxu0 %v661
        %v805 = vpop.f32.mrb[0].mxu0
        %v806 = vadd.f32 0.0, %v805
        %v807 = vpop.f32.mrb[0].mxu0
        %808 = vmatprep.mubr.f32.mxu0 0.0
        %809 = vmatmul.mubr.f32.gmra.mrb[0].mxu0 %v664
        %v810 = vpop.f32.mrb[0].mxu0
        %v811 = vadd.f32 0.0, %v810
        %v812 = vpop.f32.mrb[0].mxu0
        %813 = vdwg.mxu0
        %v814 = vadd.f32 %v521, %v736
        %v815 = vadd.f32 %v526, %v741
        %v816 = vadd.f32 %v531, %v746
        %v817 = vadd.f32 %v536, %v751
        %v818 = vadd.f32 %v541, %v756
        %v819 = vadd.f32 %v546, %v761
        %v820 = vadd.f32 %v551, %v766
        %v821 = vadd.f32 %v556, %v771
        %v822 = vadd.f32 %v561, %v776
        %v823 = vadd.f32 %v566, %v781
        %v824 = vadd.f32 %v571, %v786
        %v825 = vadd.f32 %v576, %v791
        %v826 = vadd.f32 %v581, %v796
        %v827 = vadd.f32 %v586, %v801
        %v828 = vadd.f32 %v591, %v806
        %v829 = vadd.f32 %v596, %v811
        %s830 = scalar_lea.vmem %s168, 48
        %v831 = vld [vmem:[%s830] sm:$0xff]
        %v832 = vld [vmem:[%s830 + $0x8] sm:$0xff]
        %v833 = vld [vmem:[%s830 + $0x40] sm:$0xff]
        %v834 = vld [vmem:[%s830 + $0x48] sm:$0xff]
        %v835 = vld [vmem:[%s830 + $0x80] sm:$0xff]
        %v836 = vld [vmem:[%s830 + $0x88] sm:$0xff]
        %v837 = vld [vmem:[%s830 + $0xc0] sm:$0xff]
        %v838 = vld [vmem:[%s830 + $0xc8] sm:$0xff]
        %v839 = vld [vmem:[%s830 + $0x100] sm:$0xff]
        %v840 = vld [vmem:[%s830 + $0x108] sm:$0xff]
        %v841 = vld [vmem:[%s830 + $0x140] sm:$0xff]
        %v842 = vld [vmem:[%s830 + $0x148] sm:$0xff]
        %v843 = vld [vmem:[%s830 + $0x180] sm:$0xff]
        %v844 = vld [vmem:[%s830 + $0x188] sm:$0xff]
        %v845 = vld [vmem:[%s830 + $0x1c0] sm:$0xff]
        %v846 = vld [vmem:[%s830 + $0x1c8] sm:$0xff]
        %s847 = scalar_lea.vmem %s1, 12
        %v848 = vld [vmem:[%s847] sm:$0xf]
        %v850 = vsel %vm205, %v831, 0
        %v853 = vsel %vm205, %v832, 0
        %v856 = vsel %vm205, %v833, 0
        %v859 = vsel %vm205, %v834, 0
        %v862 = vsel %vm205, %v835, 0
        %v865 = vsel %vm205, %v836, 0
        %v868 = vsel %vm205, %v837, 0
        %v871 = vsel %vm205, %v838, 0
        %v874 = vsel %vm205, %v839, 0
        %v877 = vsel %vm205, %v840, 0
        %v880 = vsel %vm205, %v841, 0
        %v883 = vsel %vm205, %v842, 0
        %v886 = vsel %vm205, %v843, 0
        %v889 = vsel %vm205, %v844, 0
        %v892 = vsel %vm205, %v845, 0
        %v895 = vsel %vm205, %v846, 0
        %v898 = vsel %vm254, %v848, 0
        %900 = vmatprep.subr.mxu0 0.0
        %901 = vmatpush1.msra.mxu0 %v898
        %902 = vmatprep.subr.mxu0 0.0
        %903 = vmatpush1.msra.mxu0 0.0
        %904 = vmatprep.subr.mxu0 0.0
        %905 = vmatpush1.msra.mxu0 0.0
        %906 = vmatprep.subr.mxu0 0.0
        %907 = vmatpush1.msra.mxu0 0.0
        %908 = vmatprep.subr.mxu0 0.0
        %909 = vmatpush1.msra.mxu0 0.0
        %910 = vmatprep.subr.mxu0 0.0
        %911 = vmatpush1.msra.mxu0 0.0
        %912 = vmatprep.subr.mxu0 0.0
        %913 = vmatpush1.msra.mxu0 0.0
        %914 = vmatprep.subr.mxu0 0.0
        %915 = vmatpush1.msra.mxu0 0.0
        %916 = vmatprep.subr.mxu0 0.0
        %917 = vmatpush1.msra.mxu0 0.0
        %918 = vmatprep.subr.mxu0 0.0
        %919 = vmatpush1.msra.mxu0 0.0
        %920 = vmatprep.subr.mxu0 0.0
        %921 = vmatpush1.msra.mxu0 0.0
        %922 = vmatprep.subr.mxu0 0.0
        %923 = vmatpush1.msra.mxu0 0.0
        %924 = vmatprep.subr.mxu0 0.0
        %925 = vmatpush1.msra.mxu0 0.0
        %926 = vmatprep.subr.mxu0 0.0
        %927 = vmatpush1.msra.mxu0 0.0
        %928 = vmatprep.subr.mxu0 0.0
        %929 = vmatpush1.msra.mxu0 0.0
        %930 = vmatprep.subr.mxu0 0.0
        %931 = vmatpush1.msra.mxu0 0.0
        %932 = vmatprep.subr.mxu0 0.0
        %933 = vmatpush1.msra.mxu0 0.0
        %934 = vmatprep.subr.mxu0 0.0
        %935 = vmatpush1.msra.mxu0 0.0
        %936 = vmatprep.subr.mxu0 0.0
        %937 = vmatpush1.msra.mxu0 0.0
        %938 = vmatprep.subr.mxu0 0.0
        %939 = vmatpush1.msra.mxu0 0.0
        %940 = vmatprep.subr.mxu0 0.0
        %941 = vmatpush1.msra.mxu0 0.0
        %942 = vmatprep.subr.mxu0 0.0
        %943 = vmatpush1.msra.mxu0 0.0
        %944 = vmatprep.subr.mxu0 0.0
        %945 = vmatpush1.msra.mxu0 0.0
        %946 = vmatprep.subr.mxu0 0.0
        %947 = vmatpush1.msra.mxu0 0.0
        %948 = vmatprep.subr.mxu0 0.0
        %949 = vmatpush1.msra.mxu0 0.0
        %950 = vmatprep.subr.mxu0 0.0
        %951 = vmatpush1.msra.mxu0 0.0
        %952 = vmatprep.subr.mxu0 0.0
        %953 = vmatpush1.msra.mxu0 0.0
        %954 = vmatprep.subr.mxu0 0.0
        %955 = vmatpush1.msra.mxu0 0.0
        %956 = vmatprep.subr.mxu0 0.0
        %957 = vmatpush1.msra.mxu0 0.0
        %958 = vmatprep.subr.mxu0 0.0
        %959 = vmatpush1.msra.mxu0 0.0
        %960 = vmatprep.subr.mxu0 0.0
        %961 = vmatpush1.msra.mxu0 0.0
        %962 = vmatprep.subr.mxu0 0.0
        %963 = vmatpush1.msra.mxu0 0.0
        %964 = vmatprep.mubr.f32.mxu0 0.0
        %965 = vmatmul.mubr.f32.gmra.mrb[0].mxu0 %v850
        %v966 = vpop.f32.mrb[0].mxu0
        %v967 = vadd.f32 0.0, %v966
        %v968 = vpop.f32.mrb[0].mxu0
        %969 = vmatprep.mubr.f32.mxu0 0.0
        %970 = vmatmul.mubr.f32.gmra.mrb[0].mxu0 %v853
        %v971 = vpop.f32.mrb[0].mxu0
        %v972 = vadd.f32 0.0, %v971
        %v973 = vpop.f32.mrb[0].mxu0
        %974 = vmatprep.mubr.f32.mxu0 0.0
        %975 = vmatmul.mubr.f32.gmra.mrb[0].mxu0 %v856
        %v976 = vpop.f32.mrb[0].mxu0
        %v977 = vadd.f32 0.0, %v976
        %v978 = vpop.f32.mrb[0].mxu0
        %979 = vmatprep.mubr.f32.mxu0 0.0
        %980 = vmatmul.mubr.f32.gmra.mrb[0].mxu0 %v859
        %v981 = vpop.f32.mrb[0].mxu0
        %v982 = vadd.f32 0.0, %v981
        %v983 = vpop.f32.mrb[0].mxu0
        %984 = vmatprep.mubr.f32.mxu0 0.0
        %985 = vmatmul.mubr.f32.gmra.mrb[0].mxu0 %v862
        %v986 = vpop.f32.mrb[0].mxu0
        %v987 = vadd.f32 0.0, %v986
        %v988 = vpop.f32.mrb[0].mxu0
        %989 = vmatprep.mubr.f32.mxu0 0.0
        %990 = vmatmul.mubr.f32.gmra.mrb[0].mxu0 %v865
        %v991 = vpop.f32.mrb[0].mxu0
        %v992 = vadd.f32 0.0, %v991
        %v993 = vpop.f32.mrb[0].mxu0
        %994 = vmatprep.mubr.f32.mxu0 0.0
        %995 = vmatmul.mubr.f32.gmra.mrb[0].mxu0 %v868
        %v996 = vpop.f32.mrb[0].mxu0
        %v997 = vadd.f32 0.0, %v996
        %v998 = vpop.f32.mrb[0].mxu0
        %999 = vmatprep.mubr.f32.mxu0 0.0
        %1000 = vmatmul.mubr.f32.gmra.mrb[0].mxu0 %v871
        %v1001 = vpop.f32.mrb[0].mxu0
        %v1002 = vadd.f32 0.0, %v1001
        %v1003 = vpop.f32.mrb[0].mxu0
        %1004 = vmatprep.mubr.f32.mxu0 0.0
        %1005 = vmatmul.mubr.f32.gmra.mrb[0].mxu0 %v874
        %v1006 = vpop.f32.mrb[0].mxu0
        %v1007 = vadd.f32 0.0, %v1006
        %v1008 = vpop.f32.mrb[0].mxu0
        %1009 = vmatprep.mubr.f32.mxu0 0.0
        %1010 = vmatmul.mubr.f32.gmra.mrb[0].mxu0 %v877
        %v1011 = vpop.f32.mrb[0].mxu0
        %v1012 = vadd.f32 0.0, %v1011
        %v1013 = vpop.f32.mrb[0].mxu0
        %1014 = vmatprep.mubr.f32.mxu0 0.0
        %1015 = vmatmul.mubr.f32.gmra.mrb[0].mxu0 %v880
        %v1016 = vpop.f32.mrb[0].mxu0
        %v1017 = vadd.f32 0.0, %v1016
        %v1018 = vpop.f32.mrb[0].mxu0
        %1019 = vmatprep.mubr.f32.mxu0 0.0
        %1020 = vmatmul.mubr.f32.gmra.mrb[0].mxu0 %v883
        %v1021 = vpop.f32.mrb[0].mxu0
        %v1022 = vadd.f32 0.0, %v1021
        %v1023 = vpop.f32.mrb[0].mxu0
        %1024 = vmatprep.mubr.f32.mxu0 0.0
        %1025 = vmatmul.mubr.f32.gmra.mrb[0].mxu0 %v886
        %v1026 = vpop.f32.mrb[0].mxu0
        %v1027 = vadd.f32 0.0, %v1026
        %v1028 = vpop.f32.mrb[0].mxu0
        %1029 = vmatprep.mubr.f32.mxu0 0.0
        %1030 = vmatmul.mubr.f32.gmra.mrb[0].mxu0 %v889
        %v1031 = vpop.f32.mrb[0].mxu0
        %v1032 = vadd.f32 0.0, %v1031
        %v1033 = vpop.f32.mrb[0].mxu0
        %1034 = vmatprep.mubr.f32.mxu0 0.0
        %1035 = vmatmul.mubr.f32.gmra.mrb[0].mxu0 %v892
        %v1036 = vpop.f32.mrb[0].mxu0
        %v1037 = vadd.f32 0.0, %v1036
        %v1038 = vpop.f32.mrb[0].mxu0
        %1039 = vmatprep.mubr.f32.mxu0 0.0
        %1040 = vmatmul.mubr.f32.gmra.mrb[0].mxu0 %v895
        %v1041 = vpop.f32.mrb[0].mxu0
        %v1042 = vadd.f32 0.0, %v1041
        %v1043 = vpop.f32.mrb[0].mxu0
        %1044 = vdwg.mxu0
        %v1045 = vadd.f32 %v814, %v967
        %v1046 = vadd.f32 %v815, %v972
        %v1047 = vadd.f32 %v816, %v977
        %v1048 = vadd.f32 %v817, %v982
        %v1049 = vadd.f32 %v818, %v987
        %v1050 = vadd.f32 %v819, %v992
        %v1051 = vadd.f32 %v820, %v997
        %v1052 = vadd.f32 %v821, %v1002
        %v1053 = vadd.f32 %v822, %v1007
        %v1054 = vadd.f32 %v823, %v1012
        %v1055 = vadd.f32 %v824, %v1017
        %v1056 = vadd.f32 %v825, %v1022
        %v1057 = vadd.f32 %v826, %v1027
        %v1058 = vadd.f32 %v827, %v1032
        %v1059 = vadd.f32 %v828, %v1037
        %v1060 = vadd.f32 %v829, %v1042
        %v1061 = vld [vmem:[%s2] sm:$0x1]
        %v1063 = vlaneseq
        %v1064 = vshrl.u32 %v1063, 7
        %v1065 = vsub.s32 0, %v1064
        %v1066 = vrot.slane %v1061, %v1065
        %v1068 = vadd.f32 %v1045, %v1066
        %v1069 = vadd.f32 %v1046, %v1066
        %v1070 = vadd.f32 %v1047, %v1066
        %v1071 = vadd.f32 %v1048, %v1066
        %v1072 = vadd.f32 %v1049, %v1066
        %v1073 = vadd.f32 %v1050, %v1066
        %v1074 = vadd.f32 %v1051, %v1066
        %v1075 = vadd.f32 %v1052, %v1066
        %v1076 = vadd.f32 %v1053, %v1066
        %v1077 = vadd.f32 %v1054, %v1066
        %v1078 = vadd.f32 %v1055, %v1066
        %v1079 = vadd.f32 %v1056, %v1066
        %v1080 = vadd.f32 %v1057, %v1066
        %v1081 = vadd.f32 %v1058, %v1066
        %v1082 = vadd.f32 %v1059, %v1066
        %v1083 = vadd.f32 %v1060, %v1066
        %1084 = vst [vmem:[%s163] sm:$0xff] %v1068
        %1085 = vst [vmem:[%s163 + $0x8] sm:$0xff] %v1069
        %1086 = vst [vmem:[%s163 + $0x10] sm:$0xff] %v1070
        %1087 = vst [vmem:[%s163 + $0x18] sm:$0xff] %v1071
        %1088 = vst [vmem:[%s163 + $0x20] sm:$0xff] %v1072
        %1089 = vst [vmem:[%s163 + $0x28] sm:$0xff] %v1073
        %1090 = vst [vmem:[%s163 + $0x30] sm:$0xff] %v1074
        %1091 = vst [vmem:[%s163 + $0x38] sm:$0xff] %v1075
        %1092 = vst [vmem:[%s163 + $0x40] sm:$0xff] %v1076
        %1093 = vst [vmem:[%s163 + $0x48] sm:$0xff] %v1077
        %1094 = vst [vmem:[%s163 + $0x50] sm:$0xff] %v1078
        %1095 = vst [vmem:[%s163 + $0x58] sm:$0xff] %v1079
        %1096 = vst [vmem:[%s163 + $0x60] sm:$0xff] %v1080
        %1097 = vst [vmem:[%s163 + $0x68] sm:$0xff] %v1081
        %1098 = vst [vmem:[%s163 + $0x70] sm:$0xff] %v1082
        %1099 = vst [vmem:[%s163 + $0x78] sm:$0xff] %v1083
        %s1100 = sand.u32 %s93, 1
        %s1101 = scalar_lea.sflag [#allocation3], %s1100
        %s1102 = sand.u32 %s93, 1
        %s1103 = smul.addr %s1102, 128
        %s1104 = scalar_lea.vmem [#allocation2], %s1103
        // Predicated region
        $region33: #{tpu_custom_call.1} parent=31 // pred_check
          %p1105 = pneg %p103
        $region34: #{tpu_custom_call.1} parent=31 // pred_check_branch
          %1107 = sbr.rel (%p1105) target = $region36
        $region35: #{tpu_custom_call.1} parent=31 // pred_region
          %s1109 = ssub.s32 2048, 2048
          %1110 = vsyncadd %s1101, %s1109
          %s1111 = smul.addr %s17, 16
          %s1112 = smul.addr %s1111, 128
          %s1113 = scalar_lea.hbm %s3, %s1112
          %s1114 = sshll.u32 %s1104, 4
          %s1115 = int_to_ptr.vmem [resolvable:$true] %s1114
          %1120 = dma.vmem_to_hbm [thread:$0]  %s1115, 2048, %s1113, %s1101, 128, 128, 8
        $region36: #{tpu_custom_call.1} parent=31 // pred_fallthru
          _
      $region32: #{tpu_custom_call.1} parent=5 // pred_fallthru
        _
      %p1121 = scmp.le.s32.totalorder 2, %s12
      // Predicated region
      $region37: #{tpu_custom_call.1} parent=5 // pred_check
        %p1122 = pneg %p1121
      $region38: #{tpu_custom_call.1} parent=5 // pred_check_branch
        %1124 = sbr.rel (%p1122) target = $region40
      $region39: #{tpu_custom_call.1} parent=5 // pred_region
        %s1125 = ssub.s32 %s12, 2
        // Predicated region
        $region41: #{tpu_custom_call.1} parent=39 // pred_check
          %p1126 = pneg %p109
        $region42: #{tpu_custom_call.1} parent=39 // pred_check_branch
          %1128 = sbr.rel (%p1126) target = $region44
        $region43: #{tpu_custom_call.1} parent=39 // pred_region
          %s1129 = sand.u32 %s94, 1
          %s1130 = scalar_lea.sflag [#allocation3], %s1129
          %s1131 = sand.u32 %s94, 1
          %s1132 = smul.addr %s1131, 128
          %s1133 = scalar_lea.vmem [#allocation2], %s1132
          %1134 = dma.done %s1130, 2048
        $region44: #{tpu_custom_call.1} parent=39 // pred_fallthru
          _
      $region40: #{tpu_custom_call.1} parent=5 // pred_fallthru
        _
    $region6: #{tpu_custom_call.1} parent=1 // loop_footer
      %s16 = sadd.s32 1, %s12
    $region7: #{tpu_custom_call.1} parent=1 // loop_footer_branch
      %11 = sbr.rel target = $region3
    $region8: #{tpu_custom_call.1} parent=1 // loop_exit
      _
    %1135 = vsyncpa [#allocation3], 1
    %s1136 = scalar_lea.sflag [#allocation3], 1
    %1137 = vsyncpa %s1136, 1

</llo_original>
